<compile_context>
chip_gen: v7x
topology: tpu7x:2x2x1
jax: 0.10.0
libtpu: 0.0.40
codegen_flags: <defaults>
</compile_context>

<pallas_src>
import jax
import jax.numpy as jnp
from jax.experimental import pallas as pl
from jax.experimental.pallas import tpu as pltpu


def _add_pos_kernel(x_ref, emb_ref, o_ref):
    # x_ref/o_ref: (bB, S, D) VMEM tiles; emb_ref: (1, S, D) (VMEM-resident,
    # fetched once thanks to its constant index_map).
    o_ref[...] = (x_ref[...] + emb_ref[...]).astype(o_ref.dtype)


def learned_positional_encoding(x, embedding, *, target_block_bytes=1 << 20):
    """x: (B, S, D), embedding: (S, D). Returns x + embedding (broadcast over B)."""
    B, S, D = x.shape
    assert embedding.shape == (S, D), (embedding.shape, (S, D))

    # Lead-dim-1 view of the table so the in-kernel add needs no broadcast op.
    emb = embedding.reshape(1, S, D)

    # Pick how many batch elements to process per grid step: target ~1 MiB
    # per x/out block (big enough to hit the HBM roofline, small enough for
    # v7x's 64 MiB VMEM with double-buffered in + out blocks).
    itemsize = jnp.dtype(x.dtype).itemsize
    per_batch_bytes = S * D * itemsize
    bB = max(1, min(B, target_block_bytes // max(per_batch_bytes, 1)))
    while B % bB != 0:  # keep the grid exact (no partial blocks)
        bB -= 1
    grid = (B // bB,)

    return pl.pallas_call(
        _add_pos_kernel,
        out_shape=jax.ShapeDtypeStruct((B, S, D), x.dtype),
        grid_spec=pltpu.PrefetchScalarGridSpec(
            num_scalar_prefetch=0,
            grid=grid,
            in_specs=[
                # Full (S, D) trailing dims -> lane-dense slabs, satisfies the
                # (8,128) rule via "block == full dim" even for S=100.
                pl.BlockSpec((bB, S, D), lambda i: (i, 0, 0)),
                # Constant index_map: embedding DMA'd once, stays resident.
                pl.BlockSpec((1, S, D), lambda i: (0, 0, 0)),
            ],
            out_specs=pl.BlockSpec((bB, S, D), lambda i: (i, 0, 0)),
        ),
        # In-place add: alias x (input 0) to the output.
        input_output_aliases={0: 0},
        compiler_params=pltpu.CompilerParams(
            dimension_semantics=("parallel",),
        ),
    )(x, emb)


if __name__ == "__main__":
    key = jax.random.PRNGKey(0)
    kx, kemb = jax.random.split(key)

    # Small shapes consistent with the module: batch=4, seq=8, hidden=128.
    B, S, D = 4, 8, 128
    x = jax.random.normal(kx, (B, S, D), dtype=jnp.float32)

    # nn.Parameter(torch.zeros(S, D)) -> deterministic synthetic init
    # (zeros would make the test trivial; use a small deterministic normal).
    embedding = 0.02 * jax.random.normal(kemb, (S, D), dtype=jnp.float32)

    out = learned_positional_encoding(x, embedding)
    out = jax.block_until_ready(out)

    ref = x + embedding[None, :, :]
    assert out.shape == (B, S, D)
    assert out.dtype == x.dtype
    assert jnp.allclose(out, ref, atol=1e-6, rtol=1e-6)

    print("KERNEL_OK")
</pallas_src>

<mosaic_0001>
module attributes {stable_mosaic.version = 11 : i64} {
  func.func @_add_pos_kernel(%arg0: i32, %arg1: memref<4x8x128xf32, #tpu.memory_space<vmem>>, %arg2: memref<1x8x128xf32, #tpu.memory_space<vmem>>, %arg3: memref<4x8x128xf32, #tpu.memory_space<vmem>>) attributes {dimension_semantics = [#tpu.dimension_semantics<parallel>], iteration_bounds = array<i64: 1>, scalar_prefetch = 0 : i64, scratch_operands = 0 : i64, tpu.core_type = #tpu.core_type<tc>, window_params = [{transform_indices = @transform_0, window_bounds = array<i64: 4, 8, 128>}, {pipeline_mode = #tpu.pipeline_mode<synchronous>, transform_indices = @transform_1, window_bounds = array<i64: 1, 8, 128>}, {transform_indices = @transform_2, window_bounds = array<i64: 4, 8, 128>}]} {
    %c0 = arith.constant 0 : index
    %c0_0 = arith.constant 0 : index
    %c0_1 = arith.constant 0 : index
    %0 = vector.load %arg1[%c0, %c0_0, %c0_1] : memref<4x8x128xf32, #tpu.memory_space<vmem>>, vector<4x8x128xf32>
    %c0_2 = arith.constant 0 : index
    %c0_3 = arith.constant 0 : index
    %c0_4 = arith.constant 0 : index
    %1 = vector.load %arg2[%c0_2, %c0_3, %c0_4] : memref<1x8x128xf32, #tpu.memory_space<vmem>>, vector<1x8x128xf32>
    %2 = vector.broadcast %1 : vector<1x8x128xf32> to vector<4x8x128xf32>
    %3 = arith.addf %0, %2 : vector<4x8x128xf32>
    %c0_5 = arith.constant 0 : index
    %c0_6 = arith.constant 0 : index
    %c0_7 = arith.constant 0 : index
    %4 = vector.load %arg3[%c0_5, %c0_6, %c0_7] : memref<4x8x128xf32, #tpu.memory_space<vmem>>, vector<4x8x128xf32>
    tpu.vector_store %arg3[%c0_5, %c0_6, %c0_7], %3 {strides = array<i32>} : memref<4x8x128xf32, #tpu.memory_space<vmem>>, vector<4x8x128xf32>,
    return
  }
  func.func @transform_0(%arg0: i32) -> (i32, i32, i32) {
    %c0_i32 = arith.constant 0 : i32
    %c0_i32_0 = arith.constant 0 : i32
    %c0_i32_1 = arith.constant 0 : i32
    return %arg0, %c0_i32, %c0_i32_0 : i32, i32, i32
  }
  func.func @transform_1(%arg0: i32) -> (i32, i32, i32) {
    %c0_i32 = arith.constant 0 : i32
    %c0_i32_0 = arith.constant 0 : i32
    %c0_i32_1 = arith.constant 0 : i32
    %c0_i32_2 = arith.constant 0 : i32
    return %c0_i32, %c0_i32_0, %c0_i32_1 : i32, i32, i32
  }
  func.func @transform_2(%arg0: i32) -> (i32, i32, i32) {
    %c0_i32 = arith.constant 0 : i32
    %c0_i32_0 = arith.constant 0 : i32
    %c0_i32_1 = arith.constant 0 : i32
    return %arg0, %c0_i32, %c0_i32_0 : i32, i32, i32
  }
}

</mosaic_0001>

<llo_original>
// kernel: tpu_custom_call.1
$region0: #{tpu_custom_call.1}
  #allocation0 [shape = 'u32[]', space=smem, size = 0x4, offset = 0x4, fixed_abs, tag = 'smem constant byte address 0x4 - core index']
  #allocation1 [shape = 'u32[144,128]{1,0:T(1,128)}', space=vmem, size = 0x12000, scoped, tag = 'internal scratch']
  %s0 = inlined_call_operand.hbm [shape: f32[4,8,128], index: 0, kind: input, shape index: {}, may-alias: {0,2}]
  %s1 = inlined_call_operand.vmem [shape: f32[1,8,128], index: 1, kind: input, shape index: {}]
  %s2 = inlined_call_operand.hbm [shape: f32[4,8,128], index: 2, kind: output, shape index: {}, may-alias: {0,2}]
  %s3 = sld [smem:[#allocation0]]
  $region22: #{tpu_custom_call.1} parent=0
    _
  %s5 = ssub.s32 1, %s3
  %s6 = scalar_select 0, %s5, %s3
  $region1: #{tpu_custom_call.1} parent=0
    #allocation2 [shape = 'u8[16384]{0}', space=vmem, size = 0x4000, scoped, tag = 'input window, operand 0, single buffered']
    #allocation3 [shape = 's32[1]{0}', space=sflag, size = 0x4, scoped, tag = 'scoped memory for tpu_custom_call.1']
    #allocation4 [shape = 's32[1]{0}', space=sflag, size = 0x4, scoped, tag = 'scoped memory for tpu_custom_call.1']
    #allocation5 [shape = 'u8[16384]{0}', space=vmem, size = 0x4000, scoped, tag = 'output window, operand 0, single buffered']
    %7 = vsyncpa [#allocation3], 0
    %8 = vsyncpa [#allocation4], 0
    // Predicated region
    $region2: #{tpu_custom_call.1} parent=1 // pred_check
      _
    $region3: #{tpu_custom_call.1} parent=1 // pred_check_branch
      %10 = sbr.rel (0) target = $region5
    $region4: #{tpu_custom_call.1} parent=1 // pred_region
      %s12 = ssub.s32 512, 512
      %13 = vsyncadd [#allocation3], %s12
      %s14 = sshll.u32 [#allocation2], 4
      %s15 = int_to_ptr.vmem [resolvable:$true] %s14
      %20 = dma.hbm_to_vmem [thread:$0]  %s0, 512, %s15, [#allocation3], 128, 128, 8
    $region5: #{tpu_custom_call.1} parent=1 // pred_fallthru
      _
    // Predicated region
    $region6: #{tpu_custom_call.1} parent=1 // pred_check
      _
    $region7: #{tpu_custom_call.1} parent=1 // pred_check_branch
      %22 = sbr.rel (0) target = $region9
    $region8: #{tpu_custom_call.1} parent=1 // pred_region
      _
    $region9: #{tpu_custom_call.1} parent=1 // pred_fallthru
      _
    // Predicated region
    $region10: #{tpu_custom_call.1} parent=1 // pred_check
      _
    $region11: #{tpu_custom_call.1} parent=1 // pred_check_branch
      %24 = sbr.rel (0) target = $region13
    $region12: #{tpu_custom_call.1} parent=1 // pred_region
      %25 = dma.done [#allocation3], 512
    $region13: #{tpu_custom_call.1} parent=1 // pred_fallthru
      _
    %v26 = vld [vmem:[#allocation2] sm:$0xff]
    %v27 = vld [vmem:[#allocation2 + $0x8] sm:$0xff]
    %v28 = vld [vmem:[#allocation2 + $0x10] sm:$0xff]
    %v29 = vld [vmem:[#allocation2 + $0x18] sm:$0xff]
    %v30 = vld [vmem:[%s1] sm:$0xff]
    %v31 = vadd.f32 %v26, %v30
    %v32 = vadd.f32 %v27, %v30
    %v33 = vadd.f32 %v28, %v30
    %v34 = vadd.f32 %v29, %v30
    %35 = vst [vmem:[#allocation5] sm:$0xff] %v31
    %36 = vst [vmem:[#allocation5 + $0x8] sm:$0xff] %v32
    %37 = vst [vmem:[#allocation5 + $0x10] sm:$0xff] %v33
    %38 = vst [vmem:[#allocation5 + $0x18] sm:$0xff] %v34
    // Predicated region
    $region14: #{tpu_custom_call.1} parent=1 // pred_check
      _
    $region15: #{tpu_custom_call.1} parent=1 // pred_check_branch
      %40 = sbr.rel (0) target = $region17
    $region16: #{tpu_custom_call.1} parent=1 // pred_region
      %s42 = ssub.s32 512, 512
      %43 = vsyncadd [#allocation4], %s42
      %s44 = sshll.u32 [#allocation5], 4
      %s45 = int_to_ptr.vmem [resolvable:$true] %s44
      %50 = dma.vmem_to_hbm [thread:$0]  %s45, 512, %s2, [#allocation4], 128, 128, 8
    $region17: #{tpu_custom_call.1} parent=1 // pred_fallthru
      _
    // Predicated region
    $region18: #{tpu_custom_call.1} parent=1 // pred_check
      _
    $region19: #{tpu_custom_call.1} parent=1 // pred_check_branch
      %52 = sbr.rel (0) target = $region21
    $region20: #{tpu_custom_call.1} parent=1 // pred_region
      %53 = dma.done [#allocation4], 512
    $region21: #{tpu_custom_call.1} parent=1 // pred_fallthru
      _
    %54 = vsyncpa [#allocation3], 1
    %55 = vsyncpa [#allocation4], 1

</llo_original>
